<compile_context>
chip_gen: v5e
topology: v5e:2x2
jax: 0.10.0
libtpu: 0.0.40
codegen_flags: <defaults>
</compile_context>

<pallas_src>
import jax
import jax.numpy as jnp
from jax.experimental import pallas as pl
from jax.experimental.pallas import tpu as pltpu


def _concat_head_kernel(x1_ref, x2_ref, w1a_ref, w1b_ref, b1_ref,
                        w2_ref, b2_ref, w3_ref, o_ref):
    # Layout: channels on sublanes, pixels on the 128-lane axis.
    x1 = x1_ref[...]                       # (C1, tm)
    x2 = x2_ref[...]                       # (C2, tm)

    # conv1 (1x1) with the channel-concat fused: W1_eff = [W1a | W1b].
    h = (jnp.dot(w1a_ref[...], x1, preferred_element_type=jnp.float32)
         + jnp.dot(w1b_ref[...], x2, preferred_element_type=jnp.float32))
    h = jnp.maximum(h + b1_ref[...], 0.0)          # BN1 folded, + ReLU (f32)
    h = h.astype(w2_ref.dtype)

    # conv2 (1x1) + BN2 (folded) + ReLU
    h = jnp.dot(w2_ref[...], h, preferred_element_type=jnp.float32)
    h = jnp.maximum(h + b2_ref[...], 0.0)
    h = h.astype(w3_ref.dtype)

    # conv3 (1x1), no BN / activation
    o_ref[...] = jnp.dot(w3_ref[...], h,
                         preferred_element_type=jnp.float32).astype(o_ref.dtype)


def concat_head_pallas(x1, x2, w1a, w1b, b1, w2, b2, w3, *, out_dtype=None,
                       tm_max=4096,
                       vmem_budget_bytes=20 * 1024 * 1024,
                       vmem_limit_bytes=32 * 1024 * 1024):
    """x1: (N, C1, HW), x2: (N, C2, HW).  Returns (N, Cseg, HW)."""
    N, C1, HW = x1.shape
    _, C2, _ = x2.shape
    C0 = w1a.shape[0]
    Cm = w2.shape[0]
    Cseg = w3.shape[0]
    out_dtype = x1.dtype if out_dtype is None else out_dtype

    in_bytes = jnp.dtype(x1.dtype).itemsize
    out_bytes = jnp.dtype(out_dtype).itemsize
    w_bytes = jnp.dtype(w1a.dtype).itemsize

    # --- VMEM-aware pixel-tile sizing (lanes per grid step) --------------
    # Per-lane bytes: 2x double-buffered input tiles + 2x output tile + the
    # f32 intermediates h1/h2.  Weights/biases are small but double-buffered
    # by the pipeline (constant index_map), so budget them too.
    per_lane = (2 * (C1 + C2) * in_bytes
                + 2 * Cseg * out_bytes
                + (C0 + Cm) * 4)
    weight_bytes = 2 * (w_bytes * (C0 * C1 + C0 * C2 + Cm * C0 + Cseg * Cm)
                        + 4 * (C0 + Cm))
    budget = max(vmem_budget_bytes - weight_bytes, 128 * per_lane)
    tm = max(128, min(tm_max, (budget // per_lane) // 128 * 128))
    tm = min(tm, pl.cdiv(HW, 128) * 128)            # never bigger than needed
    if N == 1 and HW > 128:
        # v7x megacore: guarantee >= 2 pixel tiles so both TCs get grid work.
        tm = min(tm, pl.cdiv(pl.cdiv(HW, 2), 128) * 128)

    # Ragged last pixel block is handled by Pallas (padded reads / masked
    # writes) -- safe because the computation is pointwise per pixel.
    grid = (N, pl.cdiv(HW, tm))

    def full(arr):
        return pl.BlockSpec(arr.shape, lambda n, t: (0,) * arr.ndim)

    return pl.pallas_call(
        _concat_head_kernel,
        out_shape=jax.ShapeDtypeStruct((N, Cseg, HW), out_dtype),
        grid_spec=pltpu.PrefetchScalarGridSpec(
            num_scalar_prefetch=0,
            grid=grid,
            in_specs=[
                pl.BlockSpec((None, C1, tm), lambda n, t: (n, 0, t)),  # f1 pixels
                pl.BlockSpec((None, C2, tm), lambda n, t: (n, 0, t)),  # f2 pixels
                full(w1a), full(w1b), full(b1),                        # conv1 (+BN1)
                full(w2), full(b2),                                    # conv2 (+BN2)
                full(w3),                                              # conv3
            ],
            out_specs=pl.BlockSpec((None, Cseg, tm), lambda n, t: (n, 0, t)),
        ),
        compiler_params=pltpu.CompilerParams(
            dimension_semantics=("parallel", "parallel"),
            vmem_limit_bytes=vmem_limit_bytes),
    )(x1, x2, w1a, w1b, b1, w2, b2, w3)


def _fold_bn(gamma, beta, mean, var, eps=1e-5):
    # TODO(synk): BatchNorm folded with inference (running-stat) semantics;
    # PyTorch training mode (batch statistics) would not match.
    scale = gamma / jnp.sqrt(var + eps)
    bias = beta - mean * scale
    return scale, bias


def concat_head_forward(f1, f2, params, *, io_dtype=jnp.float32, tm_max=4096):
    """f1, f2: NCHW float32. Returns NCHW output with seg_nums channels."""
    N, C1, H1, W1 = f1.shape
    _, C2, H2, W2 = f2.shape
    H, W = max(H1, H2), max(W1, W2)
    # F.interpolate(mode='bilinear', align_corners=False) == half-pixel
    # bilinear resize.  This path only ever upsamples (resize to the max
    # size), where jax.image.resize('bilinear') matches exactly.
    if (H1, W1) != (H, W):
        f1 = jax.image.resize(f1, (N, C1, H, W), method="bilinear")
    if (H2, W2) != (H, W):
        f2 = jax.image.resize(f2, (N, C2, H, W), method="bilinear")
    # TODO(synk): the 2x upsample could be fused into the kernel (4-tap VPU
    # interpolation on a quarter-res tile) to save one HBM round-trip of f2.

    # NCHW is already the kernel layout (channels on sublanes, pixels on
    # lanes): flatten H,W only -- no transposes, no HBM concat.  The optional
    # bf16 cast fuses with the resize/reshape.
    x1 = f1.reshape(N, C1, H * W).astype(io_dtype)
    x2 = f2.reshape(N, C2, H * W).astype(io_dtype)

    s1, b1 = _fold_bn(params["bn1_gamma"], params["bn1_beta"],
                      params["bn1_mean"], params["bn1_var"])
    s2, b2 = _fold_bn(params["bn2_gamma"], params["bn2_beta"],
                      params["bn2_mean"], params["bn2_var"])

    # Weights stored as (Cin, Cout); kernel wants (Cout, Cin) with the BN
    # scale folded in (each output-channel row scaled by s).
    w1t = params["w1"].T * s1[:, None]                    # (C0,  C0)
    w2t = params["w2"].T * s2[:, None]                    # (Cmid, C0)
    w3t = params["w3"].T                                  # (Cseg, Cmid)
    w1a, w1b = w1t[:, :C1], w1t[:, C1:]                   # fuse concat split
    w1a = w1a.astype(io_dtype)
    w1b = w1b.astype(io_dtype)
    w2t = w2t.astype(io_dtype)
    w3t = w3t.astype(io_dtype)

    out = concat_head_pallas(
        x1, x2, w1a, w1b,
        b1[:, None].astype(jnp.float32),                  # biases stay f32
        w2t, b2[:, None].astype(jnp.float32), w3t,
        out_dtype=io_dtype, tm_max=tm_max)
    Cseg = w3t.shape[0]
    return out.reshape(N, Cseg, H, W)                     # already NCHW


def _reference_forward(f1, f2, params):
    """Pure-JAX reference with identical math (for a sanity check)."""
    N, C1, H1, W1 = f1.shape
    _, C2, H2, W2 = f2.shape
    H, W = max(H1, H2), max(W1, W2)
    if (H1, W1) != (H, W):
        f1 = jax.image.resize(f1, (N, C1, H, W), method="bilinear")
    if (H2, W2) != (H, W):
        f2 = jax.image.resize(f2, (N, C2, H, W), method="bilinear")
    x = jnp.concatenate([f1, f2], axis=1)
    x = jnp.transpose(x, (0, 2, 3, 1))                    # NHWC
    s1, b1 = _fold_bn(params["bn1_gamma"], params["bn1_beta"],
                      params["bn1_mean"], params["bn1_var"])
    s2, b2 = _fold_bn(params["bn2_gamma"], params["bn2_beta"],
                      params["bn2_mean"], params["bn2_var"])
    h = jnp.maximum(x @ params["w1"] * s1 + b1, 0.0)
    h = jnp.maximum(h @ params["w2"] * s2 + b2, 0.0)
    out = h @ params["w3"]
    return jnp.transpose(out, (0, 3, 1, 2))


def init_params(key, in_channel, seg_nums):
    c0 = in_channel[0] + in_channel[1]
    cm = int(c0 * 0.5)
    ks = jax.random.split(key, 7)
    # Conv2d 1x1 weights stored as (Cin, Cout); the wrapper transposes to
    # (Cout, Cin) for the pixels-on-lanes kernel. (Real PyTorch weights of
    # shape (Cout, Cin, 1, 1) would be reshaped to (Cout, Cin) -> stored .T.)
    p = {
        "w1": jax.random.normal(ks[0], (c0, c0), jnp.float32) * 0.1,
        "w2": jax.random.normal(ks[1], (c0, cm), jnp.float32) * 0.1,
        "w3": jax.random.normal(ks[2], (cm, seg_nums), jnp.float32) * 0.1,
        "bn1_gamma": jnp.ones((c0,), jnp.float32) + 0.1 * jax.random.normal(ks[3], (c0,)),
        "bn1_beta": 0.1 * jax.random.normal(ks[4], (c0,), jnp.float32),
        "bn1_mean": 0.05 * jax.random.normal(ks[5], (c0,), jnp.float32),
        "bn1_var": jnp.ones((c0,), jnp.float32),
        "bn2_gamma": jnp.ones((cm,), jnp.float32),
        "bn2_beta": jnp.zeros((cm,), jnp.float32),
        "bn2_mean": 0.05 * jax.random.normal(ks[6], (cm,), jnp.float32),
        "bn2_var": jnp.ones((cm,), jnp.float32),
    }
    return p


if __name__ == "__main__":
    key = jax.random.PRNGKey(0)
    k_f1, k_f2, k_p = jax.random.split(key, 3)

    in_channel = (4, 4)      # -> out_channels = 8, middle_channels = 4
    seg_nums = 3
    N, H, W = 2, 16, 16

    # f2 at half resolution to exercise the bilinear-resize path.
    f1 = jax.random.normal(k_f1, (N, in_channel[0], H, W), jnp.float32)
    f2 = jax.random.normal(k_f2, (N, in_channel[1], H // 2, W // 2), jnp.float32)

    params = init_params(k_p, in_channel, seg_nums)
    ref = _reference_forward(f1, f2, params)

    # fp32 I/O path (default): tight check vs the pure-JAX reference.
    out = concat_head_forward(f1, f2, params)
    out = jax.block_until_ready(out)
    assert out.shape == (N, seg_nums, H, W), out.shape
    assert jnp.allclose(out, ref, atol=1e-4, rtol=1e-4), "fp32 mismatch vs reference"

    # bf16 streaming-I/O path (memory-bound win): looser tolerance.
    out_bf16 = concat_head_forward(f1, f2, params, io_dtype=jnp.bfloat16)
    out_bf16 = jax.block_until_ready(out_bf16)
    assert out_bf16.shape == (N, seg_nums, H, W), out_bf16.shape
    assert jnp.allclose(out_bf16.astype(jnp.float32), ref, atol=5e-2, rtol=5e-2), \
        "bf16 mismatch vs reference"

    print("KERNEL_OK")
</pallas_src>

<mosaic_0001>
module attributes {stable_mosaic.version = 11 : i64} {
  func.func @_concat_head_kernel(%arg0: i32, %arg1: i32, %arg2: memref<1x4x256xf32, #tpu.memory_space<vmem>>, %arg3: memref<1x4x256xf32, #tpu.memory_space<vmem>>, %arg4: memref<8x4xf32, #tpu.memory_space<vmem>>, %arg5: memref<8x4xf32, #tpu.memory_space<vmem>>, %arg6: memref<8x1xf32, #tpu.memory_space<vmem>>, %arg7: memref<4x8xf32, #tpu.memory_space<vmem>>, %arg8: memref<4x1xf32, #tpu.memory_space<vmem>>, %arg9: memref<3x4xf32, #tpu.memory_space<vmem>>, %arg10: memref<1x3x256xf32, #tpu.memory_space<vmem>>) attributes {dimension_semantics = [#tpu.dimension_semantics<parallel>, #tpu.dimension_semantics<parallel>], iteration_bounds = array<i64: 2, 1>, scalar_prefetch = 0 : i64, scratch_operands = 0 : i64, tpu.core_type = #tpu.core_type<tc>, window_params = [{transform_indices = @transform_0, window_bounds = array<i64: 1, 4, 256>}, {transform_indices = @transform_1, window_bounds = array<i64: 1, 4, 256>}, {pipeline_mode = #tpu.pipeline_mode<synchronous>, transform_indices = @transform_2, window_bounds = array<i64: 8, 4>}, {pipeline_mode = #tpu.pipeline_mode<synchronous>, transform_indices = @transform_3, window_bounds = array<i64: 8, 4>}, {pipeline_mode = #tpu.pipeline_mode<synchronous>, transform_indices = @transform_4, window_bounds = array<i64: 8, 1>}, {pipeline_mode = #tpu.pipeline_mode<synchronous>, transform_indices = @transform_5, window_bounds = array<i64: 4, 8>}, {pipeline_mode = #tpu.pipeline_mode<synchronous>, transform_indices = @transform_6, window_bounds = array<i64: 4, 1>}, {pipeline_mode = #tpu.pipeline_mode<synchronous>, transform_indices = @transform_7, window_bounds = array<i64: 3, 4>}, {transform_indices = @transform_8, window_bounds = array<i64: 1, 3, 256>}]} {
    %c0 = arith.constant 0 : index
    %c0_0 = arith.constant 0 : index
    %c0_1 = arith.constant 0 : index
    %0 = vector.load %arg2[%c0, %c0_0, %c0_1] : memref<1x4x256xf32, #tpu.memory_space<vmem>>, vector<1x4x256xf32>
    %1 = vector.shape_cast %0 : vector<1x4x256xf32> to vector<4x256xf32>
    %c0_2 = arith.constant 0 : index
    %c0_3 = arith.constant 0 : index
    %c0_4 = arith.constant 0 : index
    %2 = vector.load %arg3[%c0_2, %c0_3, %c0_4] : memref<1x4x256xf32, #tpu.memory_space<vmem>>, vector<1x4x256xf32>
    %3 = vector.shape_cast %2 : vector<1x4x256xf32> to vector<4x256xf32>
    %c0_5 = arith.constant 0 : index
    %c0_6 = arith.constant 0 : index
    %4 = vector.load %arg4[%c0_5, %c0_6] : memref<8x4xf32, #tpu.memory_space<vmem>>, vector<8x4xf32>
    %cst = arith.constant dense<0.000000e+00> : vector<8x256xf32>
    %5 = tpu.matmul %4, %1, %cst {dimension_numbers = #tpu.dot_dimension_numbers<[1], [0], [0], [1], [0, 0, 1, 1], [], []>} : vector<8x4xf32>, vector<4x256xf32>, vector<8x256xf32> -> vector<8x256xf32>
    %c0_7 = arith.constant 0 : index
    %c0_8 = arith.constant 0 : index
    %6 = vector.load %arg5[%c0_7, %c0_8] : memref<8x4xf32, #tpu.memory_space<vmem>>, vector<8x4xf32>
    %cst_9 = arith.constant dense<0.000000e+00> : vector<8x256xf32>
    %7 = tpu.matmul %6, %3, %cst_9 {dimension_numbers = #tpu.dot_dimension_numbers<[1], [0], [0], [1], [0, 0, 1, 1], [], []>} : vector<8x4xf32>, vector<4x256xf32>, vector<8x256xf32> -> vector<8x256xf32>
    %8 = arith.addf %5, %7 : vector<8x256xf32>
    %c0_10 = arith.constant 0 : index
    %c0_11 = arith.constant 0 : index
    %9 = vector.load %arg6[%c0_10, %c0_11] : memref<8x1xf32, #tpu.memory_space<vmem>>, vector<8x1xf32>
    %10 = vector.broadcast %9 : vector<8x1xf32> to vector<8x256xf32>
    %11 = arith.addf %8, %10 : vector<8x256xf32>
    %cst_12 = arith.constant 0.000000e+00 : f32
    %12 = vector.broadcast %cst_12 : f32 to vector<8x256xf32>
    %13 = arith.maximumf %11, %12 : vector<8x256xf32>
    %c0_13 = arith.constant 0 : index
    %c0_14 = arith.constant 0 : index
    %14 = vector.load %arg7[%c0_13, %c0_14] : memref<4x8xf32, #tpu.memory_space<vmem>>, vector<4x8xf32>
    %cst_15 = arith.constant dense<0.000000e+00> : vector<4x256xf32>
    %15 = tpu.matmul %14, %13, %cst_15 {dimension_numbers = #tpu.dot_dimension_numbers<[1], [0], [0], [1], [0, 0, 1, 1], [], []>} : vector<4x8xf32>, vector<8x256xf32>, vector<4x256xf32> -> vector<4x256xf32>
    %c0_16 = arith.constant 0 : index
    %c0_17 = arith.constant 0 : index
    %16 = vector.load %arg8[%c0_16, %c0_17] : memref<4x1xf32, #tpu.memory_space<vmem>>, vector<4x1xf32>
    %17 = vector.broadcast %16 : vector<4x1xf32> to vector<4x256xf32>
    %18 = arith.addf %15, %17 : vector<4x256xf32>
    %cst_18 = arith.constant 0.000000e+00 : f32
    %19 = vector.broadcast %cst_18 : f32 to vector<4x256xf32>
    %20 = arith.maximumf %18, %19 : vector<4x256xf32>
    %c0_19 = arith.constant 0 : index
    %c0_20 = arith.constant 0 : index
    %21 = vector.load %arg9[%c0_19, %c0_20] : memref<3x4xf32, #tpu.memory_space<vmem>>, vector<3x4xf32>
    %cst_21 = arith.constant dense<0.000000e+00> : vector<3x256xf32>
    %22 = tpu.matmul %21, %20, %cst_21 {dimension_numbers = #tpu.dot_dimension_numbers<[1], [0], [0], [1], [0, 0, 1, 1], [], []>} : vector<3x4xf32>, vector<4x256xf32>, vector<3x256xf32> -> vector<3x256xf32>
    %c0_22 = arith.constant 0 : index
    %c0_23 = arith.constant 0 : index
    %c0_24 = arith.constant 0 : index
    %23 = vector.load %arg10[%c0_22, %c0_23, %c0_24] : memref<1x3x256xf32, #tpu.memory_space<vmem>>, vector<1x3x256xf32>
    %24 = vector.shape_cast %23 : vector<1x3x256xf32> to vector<3x256xf32>
    %25 = vector.shape_cast %22 : vector<3x256xf32> to vector<1x3x256xf32>
    tpu.vector_store %arg10[%c0_22, %c0_23, %c0_24], %25 {strides = array<i32>} : memref<1x3x256xf32, #tpu.memory_space<vmem>>, vector<1x3x256xf32>,
    return
  }
  func.func @transform_0(%arg0: i32, %arg1: i32) -> (i32, i32, i32) {
    %c0_i32 = arith.constant 0 : i32
    %c0_i32_0 = arith.constant 0 : i32
    return %arg0, %c0_i32, %arg1 : i32, i32, i32
  }
  func.func @transform_1(%arg0: i32, %arg1: i32) -> (i32, i32, i32) {
    %c0_i32 = arith.constant 0 : i32
    %c0_i32_0 = arith.constant 0 : i32
    return %arg0, %c0_i32, %arg1 : i32, i32, i32
  }
  func.func @transform_2(%arg0: i32, %arg1: i32) -> (i32, i32) {
    %c0_i32 = arith.constant 0 : i32
    %c0_i32_0 = arith.constant 0 : i32
    %c0_i32_1 = arith.constant 0 : i32
    return %c0_i32, %c0_i32_0 : i32, i32
  }
  func.func @transform_3(%arg0: i32, %arg1: i32) -> (i32, i32) {
    %c0_i32 = arith.constant 0 : i32
    %c0_i32_0 = arith.constant 0 : i32
    %c0_i32_1 = arith.constant 0 : i32
    return %c0_i32, %c0_i32_0 : i32, i32
  }
  func.func @transform_4(%arg0: i32, %arg1: i32) -> (i32, i32) {
    %c0_i32 = arith.constant 0 : i32
    %c0_i32_0 = arith.constant 0 : i32
    %c0_i32_1 = arith.constant 0 : i32
    return %c0_i32, %c0_i32_0 : i32, i32
  }
  func.func @transform_5(%arg0: i32, %arg1: i32) -> (i32, i32) {
    %c0_i32 = arith.constant 0 : i32
    %c0_i32_0 = arith.constant 0 : i32
    %c0_i32_1 = arith.constant 0 : i32
    return %c0_i32, %c0_i32_0 : i32, i32
  }
  func.func @transform_6(%arg0: i32, %arg1: i32) -> (i32, i32) {
    %c0_i32 = arith.constant 0 : i32
    %c0_i32_0 = arith.constant 0 : i32
    %c0_i32_1 = arith.constant 0 : i32
    return %c0_i32, %c0_i32_0 : i32, i32
  }
  func.func @transform_7(%arg0: i32, %arg1: i32) -> (i32, i32) {
    %c0_i32 = arith.constant 0 : i32
    %c0_i32_0 = arith.constant 0 : i32
    %c0_i32_1 = arith.constant 0 : i32
    return %c0_i32, %c0_i32_0 : i32, i32
  }
  func.func @transform_8(%arg0: i32, %arg1: i32) -> (i32, i32, i32) {
    %c0_i32 = arith.constant 0 : i32
    %c0_i32_0 = arith.constant 0 : i32
    return %arg0, %c0_i32, %arg1 : i32, i32, i32
  }
}

</mosaic_0001>

<llo_original>
// kernel: tpu_custom_call.1
$region0: #{tpu_custom_call.1}
  #allocation0 [shape = 'u32[]', space=smem, size = 0x4, offset = 0x4, fixed_abs, tag = 'smem constant byte address 0x4 - core index']
  #allocation1 [shape = 'u32[72,128]{1,0:T(1,128)}', space=vmem, size = 0x9000, scoped, tag = 'internal scratch']
  %s0 = inlined_call_operand.vmem [shape: f32[2,4,256], index: 0, kind: input, shape index: {}]
  %s1 = inlined_call_operand.hbm [shape: f32[2,4,256], index: 1, kind: input, shape index: {}]
  %s2 = inlined_call_operand.vmem [shape: f32[8,4], index: 2, kind: input, shape index: {}]
  %s3 = inlined_call_operand.vmem [shape: f32[8,4], index: 3, kind: input, shape index: {}]
  %s4 = inlined_call_operand.vmem [shape: f32[8,1], index: 4, kind: input, shape index: {}]
  %s5 = inlined_call_operand.vmem [shape: f32[4,8], index: 5, kind: input, shape index: {}]
  %s6 = inlined_call_operand.vmem [shape: f32[4,1], index: 6, kind: input, shape index: {}]
  %s7 = inlined_call_operand.vmem [shape: f32[3,4], index: 7, kind: input, shape index: {}]
  %s8 = inlined_call_operand.vmem [shape: f32[2,3,256], index: 8, kind: output, shape index: {}]
  %s9 = sld [smem:[#allocation0]]
  $region69: #{tpu_custom_call.1} parent=0
    _
  %s11 = ssub.s32 1, %s9
  %s12 = scalar_select 0, %s11, %s9
  $region1: #{tpu_custom_call.1} parent=0
    #allocation2 [shape = 'u8[8192]{0}', space=vmem, size = 0x2000, scoped, tag = 'input window, operand 1']
    #allocation3 [shape = 's32[2]{0}', space=sflag, size = 0x8, scoped, tag = 'scoped memory for tpu_custom_call.1']
    %13 = vsyncpa [#allocation3], 0
    %s14 = scalar_lea.sflag [#allocation3], 1
    %15 = vsyncpa %s14, 0
    loop: start=0, step=1, limit=4
    $region2: #{tpu_custom_call.1} parent=1 // loop_pre_header
      _
    $region3: #{tpu_custom_call.1} parent=1 // loop_header
      %s17 = sphi 0, %s21
      %p18 = scmp.ge.s32.totalorder %s17, 4
      %s24 = sphi 0, %s36
      %s25 = sphi 0, %s32
      %s26 = sphi 0, %s24
      %s27 = sphi 0, %s25
      %s28 = sphi 0, %s26
      %s29 = sphi 0, %s27
      %s41 = sphi 0, %s43
      %s44 = sphi 0, %s41
      %s45 = sphi 0, %s44
      %s61 = sphi 0, %s45
      %s69 = sphi 0, %s71
      %s72 = sphi 0, %s69
      %s73 = sphi 0, %s72
      %s89 = sphi 0, %s73
      %s93 = sphi 0, %s93
      %s95 = sphi 0, %s93
      %s96 = sphi 0, %s95
      %s110 = sphi 0, %s96
      %s114 = sphi 0, %s114
      %s116 = sphi 0, %s114
      %s117 = sphi 0, %s116
      %s131 = sphi 0, %s117
      %s135 = sphi 0, %s135
      %s137 = sphi 0, %s135
      %s138 = sphi 0, %s137
      %s152 = sphi 0, %s138
      %s156 = sphi 0, %s156
      %s158 = sphi 0, %s156
      %s159 = sphi 0, %s158
      %s173 = sphi 0, %s159
      %s177 = sphi 0, %s177
      %s179 = sphi 0, %s177
      %s180 = sphi 0, %s179
      %s194 = sphi 0, %s180
      %s198 = sphi 0, %s198
      %s200 = sphi 0, %s198
      %s201 = sphi 0, %s200
      %s215 = sphi 0, %s201
      %s223 = sphi 0, %s225
      %s226 = sphi 0, %s223
      %s227 = sphi 0, %s226
      %s243 = sphi 0, %s227
    $region4: #{tpu_custom_call.1} parent=1 // loop_header_branch
      %20 = sbr.rel (%p18) target = $region8
    $region5: #{tpu_custom_call.1} parent=1 // loop_body
      %s22 = ssub.s32 %s17, 1
      %s23 = ssub.s32 %s17, 2
      %s30 = sadd.s32 1, %s25
      %p31 = scmp.ge.s32.totalorder %s30, 1
      %s32 = scalar_select %p31, 0, %s30
      %s33 = sadd.s32 1, %s24
      %s34 = scalar_select %p31, %s33, %s24
      %p35 = scmp.ge.s32.totalorder %s34, 2
      %s36 = scalar_select %p35, 0, %s34
      %s37 = ssub.s32 %s24, %s36
      %s38 = ssub.s32 %s25, %s32
      %s39 = sor.u32 %s37, %s38
      %p40 = scmp.eq.s32.totalorder %s39, 0
      %s42 = sadd.s32 %s41, 1
      %s43 = scalar_select %p40, %s41, %s42
      %p46 = pneg %p40
      %p47 = scmp.eq.s32.totalorder %s17, 1
      %p48 = por %p46, %p47
      %p49 = scmp.ne.s32.totalorder %s41, %s44
      %p50 = scmp.eq.s32.totalorder %s17, 0
      %p51 = por %p49, %p50
      %p52 = scmp.ne.s32.totalorder %s41, %s44
      %p53 = scmp.eq.s32.totalorder %s22, 1
      %p54 = por %p52, %p53
      %p55 = scmp.ne.s32.totalorder %s44, %s45
      %p56 = scmp.eq.s32.totalorder %s22, 0
      %p57 = por %p55, %p56
      %p58 = scmp.ne.s32.totalorder %s44, %s45
      %p59 = scmp.eq.s32.totalorder %s23, 1
      %p60 = por %p58, %p59
      %p62 = scmp.ne.s32.totalorder %s45, %s61
      %p63 = scmp.eq.s32.totalorder %s23, 0
      %p64 = por %p62, %p63
      %s65 = ssub.s32 %s24, %s36
      %s66 = ssub.s32 %s25, %s32
      %s67 = sor.u32 %s65, %s66
      %p68 = scmp.eq.s32.totalorder %s67, 0
      %s70 = sadd.s32 %s69, 1
      %s71 = scalar_select %p68, %s69, %s70
      %p74 = pneg %p68
      %p75 = scmp.eq.s32.totalorder %s17, 1
      %p76 = por %p74, %p75
      %p77 = scmp.ne.s32.totalorder %s69, %s72
      %p78 = scmp.eq.s32.totalorder %s17, 0
      %p79 = por %p77, %p78
      %p80 = scmp.ne.s32.totalorder %s69, %s72
      %p81 = scmp.eq.s32.totalorder %s22, 1
      %p82 = por %p80, %p81
      %p83 = scmp.ne.s32.totalorder %s72, %s73
      %p84 = scmp.eq.s32.totalorder %s22, 0
      %p85 = por %p83, %p84
      %p86 = scmp.ne.s32.totalorder %s72, %s73
      %p87 = scmp.eq.s32.totalorder %s23, 1
      %p88 = por %p86, %p87
      %p90 = scmp.ne.s32.totalorder %s73, %s89
      %p91 = scmp.eq.s32.totalorder %s23, 0
      %p92 = por %p90, %p91
      %s94 = sadd.s32 %s93, 1
      %p97 = scmp.eq.s32.totalorder %s17, 1
      %p98 = scmp.ne.s32.totalorder %s93, %s95
      %p99 = scmp.eq.s32.totalorder %s17, 0
      %p100 = por %p98, %p99
      %p101 = scmp.ne.s32.totalorder %s93, %s95
      %p102 = scmp.eq.s32.totalorder %s22, 1
      %p103 = por %p101, %p102
      %p104 = scmp.ne.s32.totalorder %s95, %s96
      %p105 = scmp.eq.s32.totalorder %s22, 0
      %p106 = por %p104, %p105
      %p107 = scmp.ne.s32.totalorder %s95, %s96
      %p108 = scmp.eq.s32.totalorder %s23, 1
      %p109 = por %p107, %p108
      %p111 = scmp.ne.s32.totalorder %s96, %s110
      %p112 = scmp.eq.s32.totalorder %s23, 0
      %p113 = por %p111, %p112
      %s115 = sadd.s32 %s114, 1
      %p118 = scmp.eq.s32.totalorder %s17, 1
      %p119 = scmp.ne.s32.totalorder %s114, %s116
      %p120 = scmp.eq.s32.totalorder %s17, 0
      %p121 = por %p119, %p120
      %p122 = scmp.ne.s32.totalorder %s114, %s116
      %p123 = scmp.eq.s32.totalorder %s22, 1
      %p124 = por %p122, %p123
      %p125 = scmp.ne.s32.totalorder %s116, %s117
      %p126 = scmp.eq.s32.totalorder %s22, 0
      %p127 = por %p125, %p126
      %p128 = scmp.ne.s32.totalorder %s116, %s117
      %p129 = scmp.eq.s32.totalorder %s23, 1
      %p130 = por %p128, %p129
      %p132 = scmp.ne.s32.totalorder %s117, %s131
      %p133 = scmp.eq.s32.totalorder %s23, 0
      %p134 = por %p132, %p133
      %s136 = sadd.s32 %s135, 1
      %p139 = scmp.eq.s32.totalorder %s17, 1
      %p140 = scmp.ne.s32.totalorder %s135, %s137
      %p141 = scmp.eq.s32.totalorder %s17, 0
      %p142 = por %p140, %p141
      %p143 = scmp.ne.s32.totalorder %s135, %s137
      %p144 = scmp.eq.s32.totalorder %s22, 1
      %p145 = por %p143, %p144
      %p146 = scmp.ne.s32.totalorder %s137, %s138
      %p147 = scmp.eq.s32.totalorder %s22, 0
      %p148 = por %p146, %p147
      %p149 = scmp.ne.s32.totalorder %s137, %s138
      %p150 = scmp.eq.s32.totalorder %s23, 1
      %p151 = por %p149, %p150
      %p153 = scmp.ne.s32.totalorder %s138, %s152
      %p154 = scmp.eq.s32.totalorder %s23, 0
      %p155 = por %p153, %p154
      %s157 = sadd.s32 %s156, 1
      %p160 = scmp.eq.s32.totalorder %s17, 1
      %p161 = scmp.ne.s32.totalorder %s156, %s158
      %p162 = scmp.eq.s32.totalorder %s17, 0
      %p163 = por %p161, %p162
      %p164 = scmp.ne.s32.totalorder %s156, %s158
      %p165 = scmp.eq.s32.totalorder %s22, 1
      %p166 = por %p164, %p165
      %p167 = scmp.ne.s32.totalorder %s158, %s159
      %p168 = scmp.eq.s32.totalorder %s22, 0
      %p169 = por %p167, %p168
      %p170 = scmp.ne.s32.totalorder %s158, %s159
      %p171 = scmp.eq.s32.totalorder %s23, 1
      %p172 = por %p170, %p171
      %p174 = scmp.ne.s32.totalorder %s159, %s173
      %p175 = scmp.eq.s32.totalorder %s23, 0
      %p176 = por %p174, %p175
      %s178 = sadd.s32 %s177, 1
      %p181 = scmp.eq.s32.totalorder %s17, 1
      %p182 = scmp.ne.s32.totalorder %s177, %s179
      %p183 = scmp.eq.s32.totalorder %s17, 0
      %p184 = por %p182, %p183
      %p185 = scmp.ne.s32.totalorder %s177, %s179
      %p186 = scmp.eq.s32.totalorder %s22, 1
      %p187 = por %p185, %p186
      %p188 = scmp.ne.s32.totalorder %s179, %s180
      %p189 = scmp.eq.s32.totalorder %s22, 0
      %p190 = por %p188, %p189
      %p191 = scmp.ne.s32.totalorder %s179, %s180
      %p192 = scmp.eq.s32.totalorder %s23, 1
      %p193 = por %p191, %p192
      %p195 = scmp.ne.s32.totalorder %s180, %s194
      %p196 = scmp.eq.s32.totalorder %s23, 0
      %p197 = por %p195, %p196
      %s199 = sadd.s32 %s198, 1
      %p202 = scmp.eq.s32.totalorder %s17, 1
      %p203 = scmp.ne.s32.totalorder %s198, %s200
      %p204 = scmp.eq.s32.totalorder %s17, 0
      %p205 = por %p203, %p204
      %p206 = scmp.ne.s32.totalorder %s198, %s200
      %p207 = scmp.eq.s32.totalorder %s22, 1
      %p208 = por %p206, %p207
      %p209 = scmp.ne.s32.totalorder %s200, %s201
      %p210 = scmp.eq.s32.totalorder %s22, 0
      %p211 = por %p209, %p210
      %p212 = scmp.ne.s32.totalorder %s200, %s201
      %p213 = scmp.eq.s32.totalorder %s23, 1
      %p214 = por %p212, %p213
      %p216 = scmp.ne.s32.totalorder %s201, %s215
      %p217 = scmp.eq.s32.totalorder %s23, 0
      %p218 = por %p216, %p217
      %s219 = ssub.s32 %s24, %s36
      %s220 = ssub.s32 %s25, %s32
      %s221 = sor.u32 %s219, %s220
      %p222 = scmp.eq.s32.totalorder %s221, 0
      %s224 = sadd.s32 %s223, 1
      %s225 = scalar_select %p222, %s223, %s224
      %p228 = pneg %p222
      %p229 = scmp.eq.s32.totalorder %s17, 1
      %p230 = por %p228, %p229
      %p231 = scmp.ne.s32.totalorder %s223, %s226
      %p232 = scmp.eq.s32.totalorder %s17, 0
      %p233 = por %p231, %p232
      %p234 = scmp.ne.s32.totalorder %s223, %s226
      %p235 = scmp.eq.s32.totalorder %s22, 1
      %p236 = por %p234, %p235
      %p237 = scmp.ne.s32.totalorder %s226, %s227
      %p238 = scmp.eq.s32.totalorder %s22, 0
      %p239 = por %p237, %p238
      %p240 = scmp.ne.s32.totalorder %s226, %s227
      %p241 = scmp.eq.s32.totalorder %s23, 1
      %p242 = por %p240, %p241
      %p244 = scmp.ne.s32.totalorder %s227, %s243
      %p245 = scmp.eq.s32.totalorder %s23, 0
      %p246 = por %p244, %p245
      %p247 = scmp.le.s32.totalorder 1, %s17
      %p248 = scmp.lt.s32.totalorder %s17, 3
      %p249 = pnand %p247, %p248
      %p250 = pneg %p249
      // Predicated region
      $region9: #{tpu_custom_call.1} parent=5 // pred_check
        _
      $region10: #{tpu_custom_call.1} parent=5 // pred_check_branch
        %252 = sbr.rel (%p249) target = $region12
      $region11: #{tpu_custom_call.1} parent=5 // pred_region
        %s253 = ssub.s32 %s17, 1
        // Predicated region
        $region13: #{tpu_custom_call.1} parent=11 // pred_check
          %p254 = pneg %p106
        $region14: #{tpu_custom_call.1} parent=11 // pred_check_branch
          %256 = sbr.rel (%p254) target = $region16
        $region15: #{tpu_custom_call.1} parent=11 // pred_region
          _
        $region16: #{tpu_custom_call.1} parent=11 // pred_fallthru
          _
        // Predicated region
        $region17: #{tpu_custom_call.1} parent=11 // pred_check
          %p257 = pneg %p127
        $region18: #{tpu_custom_call.1} parent=11 // pred_check_branch
          %259 = sbr.rel (%p257) target = $region20
        $region19: #{tpu_custom_call.1} parent=11 // pred_region
          _
        $region20: #{tpu_custom_call.1} parent=11 // pred_fallthru
          _
        // Predicated region
        $region21: #{tpu_custom_call.1} parent=11 // pred_check
          %p260 = pneg %p148
        $region22: #{tpu_custom_call.1} parent=11 // pred_check_branch
          %262 = sbr.rel (%p260) target = $region24
        $region23: #{tpu_custom_call.1} parent=11 // pred_region
          _
        $region24: #{tpu_custom_call.1} parent=11 // pred_fallthru
          _
        // Predicated region
        $region25: #{tpu_custom_call.1} parent=11 // pred_check
          %p263 = pneg %p169
        $region26: #{tpu_custom_call.1} parent=11 // pred_check_branch
          %265 = sbr.rel (%p263) target = $region28
        $region27: #{tpu_custom_call.1} parent=11 // pred_region
          _
        $region28: #{tpu_custom_call.1} parent=11 // pred_fallthru
          _
        // Predicated region
        $region29: #{tpu_custom_call.1} parent=11 // pred_check
          %p266 = pneg %p190
        $region30: #{tpu_custom_call.1} parent=11 // pred_check_branch
          %268 = sbr.rel (%p266) target = $region32
        $region31: #{tpu_custom_call.1} parent=11 // pred_region
          _
        $region32: #{tpu_custom_call.1} parent=11 // pred_fallthru
          _
        // Predicated region
        $region33: #{tpu_custom_call.1} parent=11 // pred_check
          %p269 = pneg %p211
        $region34: #{tpu_custom_call.1} parent=11 // pred_check_branch
          %271 = sbr.rel (%p269) target = $region36
        $region35: #{tpu_custom_call.1} parent=11 // pred_region
          _
        $region36: #{tpu_custom_call.1} parent=11 // pred_fallthru
          _
      $region12: #{tpu_custom_call.1} parent=5 // pred_fallthru
        _
      %p272 = scmp.lt.s32.totalorder %s17, 2
      // Predicated region
      $region37: #{tpu_custom_call.1} parent=5 // pred_check
        %p273 = pneg %p272
      $region38: #{tpu_custom_call.1} parent=5 // pred_check_branch
        %275 = sbr.rel (%p273) target = $region40
      $region39: #{tpu_custom_call.1} parent=5 // pred_region
        // Predicated region
        $region41: #{tpu_custom_call.1} parent=39 // pred_check
          %p276 = pneg %p51
        $region42: #{tpu_custom_call.1} parent=39 // pred_check_branch
          %278 = sbr.rel (%p276) target = $region44
        $region43: #{tpu_custom_call.1} parent=39 // pred_region
          %s279 = smul.u32 2, %s25
          %p280 = scmp.lt.s32.totalorder %s24, 1
          %s281 = scalar_select %p280, %s24, 1
          %p282 = scmp.lt.s32.totalorder %s279, 1
          %s283 = scalar_select %p282, %s279, 1
          %s284 = smul.addr %s281, 2
          %s285 = sadd.s32 %s283, %s284
          %s286 = smul.addr %s285, 4
          %s287 = scalar_lea.vmem %s0, %s286
          %s288 = smul.u32 2, %s25
        $region44: #{tpu_custom_call.1} parent=39 // pred_fallthru
          _
        // Predicated region
        $region45: #{tpu_custom_call.1} parent=39 // pred_check
          %p289 = pneg %p79
        $region46: #{tpu_custom_call.1} parent=39 // pred_check_branch
          %291 = sbr.rel (%p289) target = $region48
        $region47: #{tpu_custom_call.1} parent=39 // pred_region
          %s292 = sand.u32 %s69, 1
          %s293 = scalar_lea.sflag [#allocation3], %s292
          %s294 = sand.u32 %s69, 1
          %s295 = smul.addr %s294, 8
          %s296 = scalar_lea.vmem [#allocation2], %s295
          %s297 = smul.u32 2, %s25
          %299 = vsyncadd %s293, 0
          %s300 = smul.addr %s24, 2
          %s301 = sadd.s32 %s297, %s300
          %s302 = smul.addr %s301, 4
          %s303 = scalar_lea.hbm %s1, %s302
          %s305 = sshll.u32 %s303, 4
          %s306 = int_to_ptr.hbm [resolvable:$true] %s305
          %s307 = sshll.u32 %s296, 4
          %s308 = int_to_ptr.vmem [resolvable:$true] %s307
          %310 = dma.hbm_to_vmem [thread:$0]  %s306, 128, %s308, %s293
        $region48: #{tpu_custom_call.1} parent=39 // pred_fallthru
          _
      $region40: #{tpu_custom_call.1} parent=5 // pred_fallthru
        _
      %p311 = scmp.le.s32.totalorder 1, %s17
      %p312 = scmp.lt.s32.totalorder %s17, 3
      %p313 = pnand %p311, %p312
      %p314 = pneg %p313
      // Predicated region
      $region49: #{tpu_custom_call.1} parent=5 // pred_check
        _
      $region50: #{tpu_custom_call.1} parent=5 // pred_check_branch
        %316 = sbr.rel (%p313) target = $region52
      $region51: #{tpu_custom_call.1} parent=5 // pred_region
        %s317 = ssub.s32 %s17, 1
        %s318 = sand.u32 %s72, 1
        %s319 = scalar_lea.sflag [#allocation3], %s318
        %s320 = sand.u32 %s72, 1
        %s321 = smul.addr %s320, 8
        %s322 = scalar_lea.vmem [#allocation2], %s321
        // Predicated region
        $region53: #{tpu_custom_call.1} parent=51 // pred_check
          %p323 = pneg %p85
        $region54: #{tpu_custom_call.1} parent=51 // pred_check_branch
          %325 = sbr.rel (%p323) target = $region56
        $region55: #{tpu_custom_call.1} parent=51 // pred_region
          %327 = dma.done %s319, 128
        $region56: #{tpu_custom_call.1} parent=51 // pred_fallthru
          _
        %s328 = smul.u32 2, %s27
        %p329 = scmp.lt.s32.totalorder %s26, 1
        %s330 = scalar_select %p329, %s26, 1
        %p331 = scmp.lt.s32.totalorder %s328, 1
        %s332 = scalar_select %p331, %s328, 1
        %s333 = smul.addr %s330, 2
        %s334 = sadd.s32 %s332, %s333
        %s335 = smul.addr %s334, 4
        %s336 = scalar_lea.vmem %s0, %s335
        %p337 = pneg %p57
        %p338 = pneg %p54
        %s339 = sand.u32 %s72, 1
        %s340 = scalar_lea.sflag [#allocation3], %s339
        %s341 = sand.u32 %s72, 1
        %s342 = smul.addr %s341, 8
        %s343 = scalar_lea.vmem [#allocation2], %s342
        %p344 = pneg %p85
        %p345 = pneg %p82
        %p346 = pneg %p106
        %p347 = pneg %p103
        %p348 = pneg %p127
        %p349 = pneg %p124
        %p350 = pneg %p148
        %p351 = pneg %p145
        %p352 = pneg %p169
        %p353 = pneg %p166
        %p354 = pneg %p190
        %p355 = pneg %p187
        %p356 = pneg %p211
        %p357 = pneg %p208
        %p358 = pneg %p239
        %p359 = pneg %p236
        %s360 = smul.u32 2, %s27
        %p361 = scmp.lt.s32.totalorder %s26, 1
        %s362 = scalar_select %p361, %s26, 1
        %p363 = scmp.lt.s32.totalorder %s360, 1
        %s364 = scalar_select %p363, %s360, 1
        %s365 = smul.addr %s362, 2
        %s366 = sadd.s32 %s364, %s365
        %s367 = smul.addr %s366, 4
        %s368 = scalar_lea.vmem %s8, %s367
        %s369 = smul.u32 2, %s27
        %p370 = scmp.lt.s32.totalorder %s26, 1
        %s371 = scalar_select %p370, %s26, 1
        %p372 = scmp.lt.s32.totalorder %s369, 1
        %s373 = scalar_select %p372, %s369, 1
        %s374 = smul.addr %s371, 2
        %s375 = sadd.s32 %s373, %s374
        %s376 = smul.addr %s375, 4
        %s377 = scalar_lea.vmem %s0, %s376
        %s378 = smul.u32 2, %s27
        %s379 = smul.u32 2, %s27
        %s380 = smul.u32 2, %s27
        %p381 = scmp.lt.s32.totalorder %s26, 1
        %s382 = scalar_select %p381, %s26, 1
        %p383 = scmp.lt.s32.totalorder %s380, 1
        %s384 = scalar_select %p383, %s380, 1
        %s385 = smul.addr %s382, 2
        %s386 = sadd.s32 %s384, %s385
        %s387 = smul.addr %s386, 4
        %s388 = scalar_lea.vmem %s8, %s387
        %s389 = smul.u32 2, %s27
        %v390 = vld [vmem:[%s377] sm:$0xff]
        %v391 = vld [vmem:[%s322] sm:$0xff]
        %v392 = vld [vmem:[%s2] sm:$0xff]
        %v393 = vld [vmem:[%s3] sm:$0xff]
        %395 = vst [vmem:[#allocation1] ss:$2 sm:$0xff] %v391
        %v396 = vld.sshfl [vmem:[#allocation1] sm:$0xff pattern:$0x75316420]
        %v397 = vld.sshfl [vmem:[#allocation1 + $0x8] sm:$0xff pattern:$0x75316420]
        %vm398 = vcmask 31744
        %v400 = vsel %vm398, %v393, 0
        %vm402 = vcmask 1043456
        %v403 = vsel %vm402, %v396, 0
        %v405 = vsel %vm402, %v397, 0
        %407 = vmatpush.msra.mxu0 0.0
        %408 = vmatpush.msra.mxu0 0.0
        %409 = vmatpush.msra.mxu0 0.0
        %410 = vmatpush.msra.mxu0 0.0
        %411 = vmatpush.msra.mxu0 0.0
        %412 = vmatpush.msra.mxu0 0.0
        %413 = vmatpush.msra.mxu0 0.0
        %414 = vmatpush.msra.mxu0 0.0
        %415 = vmatpush.msra.mxu0 0.0
        %416 = vmatpush.msra.mxu0 0.0
        %417 = vmatpush.msra.mxu0 0.0
        %418 = vmatpush.msra.mxu0 0.0
        %419 = vmatpush.msra.mxu0 0.0
        %420 = vmatpush.msra.mxu0 0.0
        %421 = vmatpush.msra.mxu0 0.0
        %422 = vmatpush.msra.mxu0 %v403
        %423 = vmatmul.f32.gmra.mxu0 %v400
        %v424 = vpop.f32.mrf.mxu0
        %v425 = vadd.f32 0.0, %v424
        %426 = vdwg.mxu0
        %427 = vmatpush.msra.mxu0 0.0
        %428 = vmatpush.msra.mxu0 0.0
        %429 = vmatpush.msra.mxu0 0.0
        %430 = vmatpush.msra.mxu0 0.0
        %431 = vmatpush.msra.mxu0 0.0
        %432 = vmatpush.msra.mxu0 0.0
        %433 = vmatpush.msra.mxu0 0.0
        %434 = vmatpush.msra.mxu0 0.0
        %435 = vmatpush.msra.mxu0 0.0
        %436 = vmatpush.msra.mxu0 0.0
        %437 = vmatpush.msra.mxu0 0.0
        %438 = vmatpush.msra.mxu0 0.0
        %439 = vmatpush.msra.mxu0 0.0
        %440 = vmatpush.msra.mxu0 0.0
        %441 = vmatpush.msra.mxu0 0.0
        %442 = vmatpush.msra.mxu0 %v405
        %443 = vmatmul.f32.gmra.mxu0 %v400
        %v444 = vpop.f32.mrf.mxu0
        %v445 = vadd.f32 0.0, %v444
        %446 = vdwg.mxu0
        %448 = vst [vmem:[#allocation1] ss:$2 sm:$0xff] %v390
        %v449 = vld.sshfl [vmem:[#allocation1] sm:$0xff pattern:$0x75316420]
        %v450 = vld.sshfl [vmem:[#allocation1 + $0x8] sm:$0xff pattern:$0x75316420]
        %v452 = vsel %vm398, %v392, 0
        %v454 = vsel %vm402, %v449, 0
        %v456 = vsel %vm402, %v450, 0
        %458 = vmatpush.msra.mxu0 0.0
        %459 = vmatpush.msra.mxu0 0.0
        %460 = vmatpush.msra.mxu0 0.0
        %461 = vmatpush.msra.mxu0 0.0
        %462 = vmatpush.msra.mxu0 0.0
        %463 = vmatpush.msra.mxu0 0.0
        %464 = vmatpush.msra.mxu0 0.0
        %465 = vmatpush.msra.mxu0 0.0
        %466 = vmatpush.msra.mxu0 0.0
        %467 = vmatpush.msra.mxu0 0.0
        %468 = vmatpush.msra.mxu0 0.0
        %469 = vmatpush.msra.mxu0 0.0
        %470 = vmatpush.msra.mxu0 0.0
        %471 = vmatpush.msra.mxu0 0.0
        %472 = vmatpush.msra.mxu0 0.0
        %473 = vmatpush.msra.mxu0 %v454
        %474 = vmatmul.f32.gmra.mxu0 %v452
        %v475 = vpop.f32.mrf.mxu0
        %v476 = vadd.f32 %v425, %v475
        %477 = vdwg.mxu0
        %478 = vmatpush.msra.mxu0 0.0
        %479 = vmatpush.msra.mxu0 0.0
        %480 = vmatpush.msra.mxu0 0.0
        %481 = vmatpush.msra.mxu0 0.0
        %482 = vmatpush.msra.mxu0 0.0
        %483 = vmatpush.msra.mxu0 0.0
        %484 = vmatpush.msra.mxu0 0.0
        %485 = vmatpush.msra.mxu0 0.0
        %486 = vmatpush.msra.mxu0 0.0
        %487 = vmatpush.msra.mxu0 0.0
        %488 = vmatpush.msra.mxu0 0.0
        %489 = vmatpush.msra.mxu0 0.0
        %490 = vmatpush.msra.mxu0 0.0
        %491 = vmatpush.msra.mxu0 0.0
        %492 = vmatpush.msra.mxu0 0.0
        %493 = vmatpush.msra.mxu0 %v456
        %494 = vmatmul.f32.gmra.mxu0 %v452
        %v495 = vpop.f32.mrf.mxu0
        %v496 = vadd.f32 %v445, %v495
        %497 = vdwg.mxu0
        %v498 = vld [vmem:[%s4] sm:$0xff]
        %500 = vset.pattern.permute.xlu0 0
        %501 = vperm.xlu0 %500, %v498
        %v502 = vpop.permute.xlu0 %501
        %v504 = vadd.f32 %v476, %v502
        %v505 = vadd.f32 %v496, %v502
        %v506 = vmax.f32 %v504, 0.0
        %v507 = vmax.f32 %v505, 0.0
        %v508 = vld [vmem:[%s5] sm:$0xf]
        %v509 = vld [vmem:[%s6] sm:$0xf]
        %511 = vset.pattern.permute.xlu0 0
        %512 = vperm.xlu0 %511, %v509
        %v513 = vpop.permute.xlu0 %512
        %vm515 = vcmask 64512
        %v517 = vsel %vm515, %v508, 0
        %519 = vmatpush.msra.mxu0 0.0
        %520 = vmatpush.msra.mxu0 0.0
        %521 = vmatpush.msra.mxu0 0.0
        %522 = vmatpush.msra.mxu0 0.0
        %523 = vmatpush.msra.mxu0 0.0
        %524 = vmatpush.msra.mxu0 0.0
        %525 = vmatpush.msra.mxu0 0.0
        %526 = vmatpush.msra.mxu0 0.0
        %527 = vmatpush.msra.mxu0 0.0
        %528 = vmatpush.msra.mxu0 0.0
        %529 = vmatpush.msra.mxu0 0.0
        %530 = vmatpush.msra.mxu0 0.0
        %531 = vmatpush.msra.mxu0 0.0
        %532 = vmatpush.msra.mxu0 0.0
        %533 = vmatpush.msra.mxu0 0.0
        %534 = vmatpush.msra.mxu0 %v506
        %535 = vmatmul.f32.gmra.mxu0 %v517
        %v536 = vpop.f32.mrf.mxu0
        %v537 = vadd.f32 %v513, %v536
        %538 = vdwg.mxu0
        %539 = vmatpush.msra.mxu0 0.0
        %540 = vmatpush.msra.mxu0 0.0
        %541 = vmatpush.msra.mxu0 0.0
        %542 = vmatpush.msra.mxu0 0.0
        %543 = vmatpush.msra.mxu0 0.0
        %544 = vmatpush.msra.mxu0 0.0
        %545 = vmatpush.msra.mxu0 0.0
        %546 = vmatpush.msra.mxu0 0.0
        %547 = vmatpush.msra.mxu0 0.0
        %548 = vmatpush.msra.mxu0 0.0
        %549 = vmatpush.msra.mxu0 0.0
        %550 = vmatpush.msra.mxu0 0.0
        %551 = vmatpush.msra.mxu0 0.0
        %552 = vmatpush.msra.mxu0 0.0
        %553 = vmatpush.msra.mxu0 0.0
        %554 = vmatpush.msra.mxu0 %v507
        %555 = vmatmul.f32.gmra.mxu0 %v517
        %v556 = vpop.f32.mrf.mxu0
        %v557 = vadd.f32 %v513, %v556
        %558 = vdwg.mxu0
        %v559 = vmax.f32 %v537, 0.0
        %v560 = vmax.f32 %v557, 0.0
        %v561 = vld [vmem:[%s7] sm:$0x7]
        %v563 = vsel %vm398, %v561, 0
        %v566 = vsel %vm402, %v559, 0
        %v569 = vsel %vm402, %v560, 0
        %571 = vmatpush.msra.mxu0 0.0
        %572 = vmatpush.msra.mxu0 0.0
        %573 = vmatpush.msra.mxu0 0.0
        %574 = vmatpush.msra.mxu0 0.0
        %575 = vmatpush.msra.mxu0 0.0
        %576 = vmatpush.msra.mxu0 0.0
        %577 = vmatpush.msra.mxu0 0.0
        %578 = vmatpush.msra.mxu0 0.0
        %579 = vmatpush.msra.mxu0 0.0
        %580 = vmatpush.msra.mxu0 0.0
        %581 = vmatpush.msra.mxu0 0.0
        %582 = vmatpush.msra.mxu0 0.0
        %583 = vmatpush.msra.mxu0 0.0
        %584 = vmatpush.msra.mxu0 0.0
        %585 = vmatpush.msra.mxu0 0.0
        %586 = vmatpush.msra.mxu0 %v566
        %587 = vmatmul.f32.gmra.mxu0 %v563
        %v588 = vpop.f32.mrf.mxu0
        %v589 = vadd.f32 0.0, %v588
        %590 = vdwg.mxu0
        %591 = vmatpush.msra.mxu0 0.0
        %592 = vmatpush.msra.mxu0 0.0
        %593 = vmatpush.msra.mxu0 0.0
        %594 = vmatpush.msra.mxu0 0.0
        %595 = vmatpush.msra.mxu0 0.0
        %596 = vmatpush.msra.mxu0 0.0
        %597 = vmatpush.msra.mxu0 0.0
        %598 = vmatpush.msra.mxu0 0.0
        %599 = vmatpush.msra.mxu0 0.0
        %600 = vmatpush.msra.mxu0 0.0
        %601 = vmatpush.msra.mxu0 0.0
        %602 = vmatpush.msra.mxu0 0.0
        %603 = vmatpush.msra.mxu0 0.0
        %604 = vmatpush.msra.mxu0 0.0
        %605 = vmatpush.msra.mxu0 0.0
        %606 = vmatpush.msra.mxu0 %v569
        %607 = vmatmul.f32.gmra.mxu0 %v563
        %v608 = vpop.f32.mrf.mxu0
        %v609 = vadd.f32 0.0, %v608
        %610 = vdwg.mxu0
        %v613 = vrot.slane %v609, 4
        %v614 = vsel %vm402, %v589, %v613
        %616 = vst [vmem:[%s388] sm:$0x77] %v614
        %s617 = smul.u32 2, %s27
        %p618 = scmp.lt.s32.totalorder %s26, 1
        %s619 = scalar_select %p618, %s26, 1
        %p620 = scmp.lt.s32.totalorder %s617, 1
        %s621 = scalar_select %p620, %s617, 1
        %s622 = smul.addr %s619, 2
        %s623 = sadd.s32 %s621, %s622
        %s624 = smul.addr %s623, 4
        %s625 = scalar_lea.vmem %s8, %s624
        // Predicated region
        $region57: #{tpu_custom_call.1} parent=51 // pred_check
          %p626 = pneg %p236
        $region58: #{tpu_custom_call.1} parent=51 // pred_check_branch
          %628 = sbr.rel (%p626) target = $region60
        $region59: #{tpu_custom_call.1} parent=51 // pred_region
          %s629 = smul.u32 2, %s27
        $region60: #{tpu_custom_call.1} parent=51 // pred_fallthru
          _
      $region52: #{tpu_custom_call.1} parent=5 // pred_fallthru
        _
      %p630 = scmp.le.s32.totalorder 2, %s17
      // Predicated region
      $region61: #{tpu_custom_call.1} parent=5 // pred_check
        %p631 = pneg %p630
      $region62: #{tpu_custom_call.1} parent=5 // pred_check_branch
        %633 = sbr.rel (%p631) target = $region64
      $region63: #{tpu_custom_call.1} parent=5 // pred_region
        %s634 = ssub.s32 %s17, 2
        // Predicated region
        $region65: #{tpu_custom_call.1} parent=63 // pred_check
          %p635 = pneg %p242
        $region66: #{tpu_custom_call.1} parent=63 // pred_check_branch
          %637 = sbr.rel (%p635) target = $region68
        $region67: #{tpu_custom_call.1} parent=63 // pred_region
          %s638 = smul.u32 2, %s29
          %p639 = scmp.lt.s32.totalorder %s28, 1
          %s640 = scalar_select %p639, %s28, 1
          %p641 = scmp.lt.s32.totalorder %s638, 1
          %s642 = scalar_select %p641, %s638, 1
          %s643 = smul.addr %s640, 2
          %s644 = sadd.s32 %s642, %s643
          %s645 = smul.addr %s644, 4
          %s646 = scalar_lea.vmem %s8, %s645
        $region68: #{tpu_custom_call.1} parent=63 // pred_fallthru
          _
      $region64: #{tpu_custom_call.1} parent=5 // pred_fallthru
        _
    $region6: #{tpu_custom_call.1} parent=1 // loop_footer
      %s21 = sadd.s32 1, %s17
    $region7: #{tpu_custom_call.1} parent=1 // loop_footer_branch
      %16 = sbr.rel target = $region3
    $region8: #{tpu_custom_call.1} parent=1 // loop_exit
      _
    %647 = vsyncpa [#allocation3], 1
    %s648 = scalar_lea.sflag [#allocation3], 1
    %649 = vsyncpa %s648, 1

</llo_original>
